<compile_context>
chip_gen: v6e
topology: v6e:2x2x1
jax: 0.10.0
libtpu: 0.0.40
codegen_flags: <defaults>
</compile_context>

<pallas_src>
import functools

import jax
import jax.numpy as jnp
from jax.experimental import pallas as pl
from jax.experimental.pallas import tpu as pltpu


def _round_up(x, m):
    return ((x + m - 1) // m) * m


def _actor_kernel(x_ref, w1_ref, b1_ref, w2_ref, b2_ref, out_ref):
    # x_ref:  (bm, state_dim)        f32
    # w1_ref: (state_dim, hidden)    f32   (VMEM-resident, constant index_map)
    # b1_ref: (1, hidden)            f32
    # w2_ref: (hidden, action_dim)   f32
    # b2_ref: (1, action_dim)        f32
    # out_ref: (bm, action_dim)      f32   (narrow, masked store hides under DMA)
    x = x_ref[...]

    # Linear(state_dim, 64) + ReLU  (MXU matmul, f32 accumulation)
    h = jnp.dot(x, w1_ref[...], preferred_element_type=jnp.float32) + b1_ref[...]
    h = jnp.maximum(h, 0.0)

    # Linear(64, action_dim)
    logits = jnp.dot(h, w2_ref[...], preferred_element_type=jnp.float32) + b2_ref[...]

    # Softmax(dim=-1), numerically stable, exact divide (EUP/VPU have slack).
    m = jnp.max(logits, axis=-1, keepdims=True)
    e = jnp.exp(logits - m)
    denom = jnp.sum(e, axis=-1, keepdims=True)
    out_ref[...] = (e / denom).astype(out_ref.dtype)


@functools.partial(jax.jit, static_argnames=("block_b",))
def actor_forward(state, w1, b1, w2, b2, *, block_b=2048):
    """Pallas forward pass of Actor.

    state: (B, state_dim) float32
    w1: (state_dim, hidden) f32, b1: (1, hidden) f32
    w2: (hidden, action_dim) f32, b2: (1, action_dim) f32
    Returns (B, action_dim) float32 probabilities.
    """
    B, state_dim = state.shape
    hidden = w1.shape[1]
    action_dim = w2.shape[1]

    # Batch tile: big by default (amortize per-step overhead), clamped down for
    # tiny batches.  No wrapper-side padding: Pallas handles the ragged tail.
    bm = int(max(8, min(block_b, _round_up(B, 8))))
    grid = (pl.cdiv(B, bm),)

    cost = pl.CostEstimate(
        flops=2 * B * (state_dim * hidden + hidden * action_dim),
        transcendentals=B * action_dim,
        bytes_accessed=4 * (B * state_dim + B * action_dim
                            + state_dim * hidden + hidden
                            + hidden * action_dim + action_dim),
    )

    out = pl.pallas_call(
        _actor_kernel,
        out_shape=jax.ShapeDtypeStruct((B, action_dim), jnp.float32),
        grid_spec=pltpu.PrefetchScalarGridSpec(
            num_scalar_prefetch=0,
            grid=grid,
            in_specs=[
                pl.BlockSpec((bm, state_dim), lambda i: (i, 0)),       # state tile
                pl.BlockSpec((state_dim, hidden), lambda i: (0, 0)),   # W1 (resident)
                pl.BlockSpec((1, hidden), lambda i: (0, 0)),           # b1
                pl.BlockSpec((hidden, action_dim), lambda i: (0, 0)),  # W2 (resident)
                pl.BlockSpec((1, action_dim), lambda i: (0, 0)),       # b2
            ],
            out_specs=pl.BlockSpec((bm, action_dim), lambda i: (i, 0)),
        ),
        compiler_params=pltpu.CompilerParams(
            # Batch rows are independent -> shard grid across TCs on v7x.
            dimension_semantics=("parallel",),
        ),
        cost_estimate=cost,
    )(state, w1, b1, w2, b2)

    return out


def init_actor_params(key, state_dim, action_dim, hidden=64):
    """Deterministic synthetic parameters (PyTorch-style uniform fan-in init),
    created once in their final shapes/dtypes (no per-call prep in the hot path)."""
    k1, k2, k3, k4 = jax.random.split(key, 4)
    bound1 = 1.0 / jnp.sqrt(state_dim)
    bound2 = 1.0 / jnp.sqrt(hidden)
    w1 = jax.random.uniform(k1, (state_dim, hidden), jnp.float32, -bound1, bound1)
    b1 = jax.random.uniform(k2, (1, hidden), jnp.float32, -bound1, bound1)
    w2 = jax.random.uniform(k3, (hidden, action_dim), jnp.float32, -bound2, bound2)
    b2 = jax.random.uniform(k4, (1, action_dim), jnp.float32, -bound2, bound2)
    return w1, b1, w2, b2


def actor_forward_ref(state, w1, b1, w2, b2):
    h = jnp.maximum(state @ w1 + b1, 0.0)
    logits = h @ w2 + b2
    return jax.nn.softmax(logits, axis=-1)


if __name__ == "__main__":
    state_dim = 32
    action_dim = 8

    key = jax.random.PRNGKey(0)
    k_params, k_state_small, k_state_big = jax.random.split(key, 3)
    w1, b1, w2, b2 = init_actor_params(k_params, state_dim, action_dim)

    # --- small demo batch (single grid step, bm clamped to 8) ---------------
    batch = 8
    state = jax.random.normal(k_state_small, (batch, state_dim), jnp.float32)
    probs = actor_forward(state, w1, b1, w2, b2)
    probs = jax.block_until_ready(probs)

    ref = actor_forward_ref(state, w1, b1, w2, b2)
    assert probs.shape == (batch, action_dim)
    assert jnp.allclose(probs, ref, atol=1e-5, rtol=1e-5)
    assert jnp.allclose(jnp.sum(probs, axis=-1), 1.0, atol=1e-5)

    # --- larger batch: default big tile (single step) and small tile with a
    # ragged last block (multi-step grid, no wrapper padding) -----------------
    big_batch = 1000
    state_big = jax.random.normal(k_state_big, (big_batch, state_dim), jnp.float32)
    ref_big = actor_forward_ref(state_big, w1, b1, w2, b2)

    probs_big = actor_forward(state_big, w1, b1, w2, b2)           # bm=1008, grid=1
    probs_big = jax.block_until_ready(probs_big)
    assert probs_big.shape == (big_batch, action_dim)
    assert jnp.allclose(probs_big, ref_big, atol=1e-5, rtol=1e-5)
    assert jnp.allclose(jnp.sum(probs_big, axis=-1), 1.0, atol=1e-5)

    probs_rag = actor_forward(state_big, w1, b1, w2, b2, block_b=256)  # grid=4, ragged tail
    probs_rag = jax.block_until_ready(probs_rag)
    assert probs_rag.shape == (big_batch, action_dim)
    assert jnp.allclose(probs_rag, ref_big, atol=1e-5, rtol=1e-5)
    assert jnp.allclose(jnp.sum(probs_rag, axis=-1), 1.0, atol=1e-5)

    print("KERNEL_OK")
</pallas_src>

<mosaic_0001>
module attributes {stable_mosaic.version = 11 : i64} {
  func.func @_actor_kernel(%arg0: i32, %arg1: memref<8x32xf32, #tpu.memory_space<vmem>>, %arg2: memref<32x64xf32, #tpu.memory_space<vmem>>, %arg3: memref<1x64xf32, #tpu.memory_space<vmem>>, %arg4: memref<64x8xf32, #tpu.memory_space<vmem>>, %arg5: memref<1x8xf32, #tpu.memory_space<vmem>>, %arg6: memref<8x8xf32, #tpu.memory_space<vmem>>) attributes {dimension_semantics = [#tpu.dimension_semantics<parallel>], iteration_bounds = array<i64: 1>, scalar_prefetch = 0 : i64, scratch_operands = 0 : i64, tpu.core_type = #tpu.core_type<tc>, window_params = [{transform_indices = @transform_0, window_bounds = array<i64: 8, 32>}, {pipeline_mode = #tpu.pipeline_mode<synchronous>, transform_indices = @transform_1, window_bounds = array<i64: 32, 64>}, {pipeline_mode = #tpu.pipeline_mode<synchronous>, transform_indices = @transform_2, window_bounds = array<i64: 1, 64>}, {pipeline_mode = #tpu.pipeline_mode<synchronous>, transform_indices = @transform_3, window_bounds = array<i64: 64, 8>}, {pipeline_mode = #tpu.pipeline_mode<synchronous>, transform_indices = @transform_4, window_bounds = array<i64: 1, 8>}, {transform_indices = @transform_5, window_bounds = array<i64: 8, 8>}]} {
    %c0 = arith.constant 0 : index
    %c0_0 = arith.constant 0 : index
    %0 = vector.load %arg1[%c0, %c0_0] : memref<8x32xf32, #tpu.memory_space<vmem>>, vector<8x32xf32>
    %c0_1 = arith.constant 0 : index
    %c0_2 = arith.constant 0 : index
    %1 = vector.load %arg2[%c0_1, %c0_2] : memref<32x64xf32, #tpu.memory_space<vmem>>, vector<32x64xf32>
    %cst = arith.constant dense<0.000000e+00> : vector<8x64xf32>
    %2 = tpu.matmul %0, %1, %cst {dimension_numbers = #tpu.dot_dimension_numbers<[1], [0], [0], [1], [0, 0, 1, 1], [], []>} : vector<8x32xf32>, vector<32x64xf32>, vector<8x64xf32> -> vector<8x64xf32>
    %c0_3 = arith.constant 0 : index
    %c0_4 = arith.constant 0 : index
    %3 = vector.load %arg3[%c0_3, %c0_4] : memref<1x64xf32, #tpu.memory_space<vmem>>, vector<1x64xf32>
    %4 = vector.broadcast %3 : vector<1x64xf32> to vector<8x64xf32>
    %5 = arith.addf %2, %4 : vector<8x64xf32>
    %cst_5 = arith.constant 0.000000e+00 : f32
    %6 = vector.broadcast %cst_5 : f32 to vector<8x64xf32>
    %7 = arith.maximumf %5, %6 : vector<8x64xf32>
    %c0_6 = arith.constant 0 : index
    %c0_7 = arith.constant 0 : index
    %8 = vector.load %arg4[%c0_6, %c0_7] : memref<64x8xf32, #tpu.memory_space<vmem>>, vector<64x8xf32>
    %cst_8 = arith.constant dense<0.000000e+00> : vector<8x8xf32>
    %9 = tpu.matmul %7, %8, %cst_8 {dimension_numbers = #tpu.dot_dimension_numbers<[1], [0], [0], [1], [0, 0, 1, 1], [], []>} : vector<8x64xf32>, vector<64x8xf32>, vector<8x8xf32> -> vector<8x8xf32>
    %c0_9 = arith.constant 0 : index
    %c0_10 = arith.constant 0 : index
    %10 = vector.load %arg5[%c0_9, %c0_10] : memref<1x8xf32, #tpu.memory_space<vmem>>, vector<1x8xf32>
    %11 = vector.broadcast %10 : vector<1x8xf32> to vector<8x8xf32>
    %12 = arith.addf %9, %11 : vector<8x8xf32>
    %cst_11 = arith.constant dense<0xFF800000> : vector<8xf32>
    %13 = vector.multi_reduction <maximumf>, %12, %cst_11 [1] : vector<8x8xf32> to vector<8xf32>
    %14 = vector.shape_cast %13 : vector<8xf32> to vector<8x1xf32>
    %15 = vector.broadcast %14 : vector<8x1xf32> to vector<8x8xf32>
    %16 = arith.subf %12, %15 : vector<8x8xf32>
    %17 = math.exp %16 : vector<8x8xf32>
    %cst_12 = arith.constant dense<0.000000e+00> : vector<8xf32>
    %18 = vector.multi_reduction <add>, %17, %cst_12 [1] : vector<8x8xf32> to vector<8xf32>
    %19 = vector.shape_cast %18 : vector<8xf32> to vector<8x1xf32>
    %20 = vector.broadcast %19 : vector<8x1xf32> to vector<8x8xf32>
    %21 = arith.divf %17, %20 : vector<8x8xf32>
    %c0_13 = arith.constant 0 : index
    %c0_14 = arith.constant 0 : index
    %22 = vector.load %arg6[%c0_13, %c0_14] : memref<8x8xf32, #tpu.memory_space<vmem>>, vector<8x8xf32>
    tpu.vector_store %arg6[%c0_13, %c0_14], %21 {strides = array<i32>} : memref<8x8xf32, #tpu.memory_space<vmem>>, vector<8x8xf32>,
    return
  }
  func.func @transform_0(%arg0: i32) -> (i32, i32) {
    %c0_i32 = arith.constant 0 : i32
    %c0_i32_0 = arith.constant 0 : i32
    return %arg0, %c0_i32 : i32, i32
  }
  func.func @transform_1(%arg0: i32) -> (i32, i32) {
    %c0_i32 = arith.constant 0 : i32
    %c0_i32_0 = arith.constant 0 : i32
    %c0_i32_1 = arith.constant 0 : i32
    return %c0_i32, %c0_i32_0 : i32, i32
  }
  func.func @transform_2(%arg0: i32) -> (i32, i32) {
    %c0_i32 = arith.constant 0 : i32
    %c0_i32_0 = arith.constant 0 : i32
    %c0_i32_1 = arith.constant 0 : i32
    return %c0_i32, %c0_i32_0 : i32, i32
  }
  func.func @transform_3(%arg0: i32) -> (i32, i32) {
    %c0_i32 = arith.constant 0 : i32
    %c0_i32_0 = arith.constant 0 : i32
    %c0_i32_1 = arith.constant 0 : i32
    return %c0_i32, %c0_i32_0 : i32, i32
  }
  func.func @transform_4(%arg0: i32) -> (i32, i32) {
    %c0_i32 = arith.constant 0 : i32
    %c0_i32_0 = arith.constant 0 : i32
    %c0_i32_1 = arith.constant 0 : i32
    return %c0_i32, %c0_i32_0 : i32, i32
  }
  func.func @transform_5(%arg0: i32) -> (i32, i32) {
    %c0_i32 = arith.constant 0 : i32
    %c0_i32_0 = arith.constant 0 : i32
    return %arg0, %c0_i32 : i32, i32
  }
}

</mosaic_0001>

<llo_original>
// kernel: actor_forward.1
$region0: #{actor_forward.1}
  #allocation0 [shape = 'u32[]', space=smem, size = 0x4, offset = 0x4, fixed_abs, tag = 'smem constant byte address 0x4 - core index']
  #allocation1 [shape = 'u32[144,128]{1,0:T(1,128)}', space=vmem, size = 0x12000, scoped, tag = 'internal scratch']
  %s0 = inlined_call_operand.vmem [shape: f32[8,32], index: 0, kind: input, shape index: {}]
  %s1 = inlined_call_operand.vmem [shape: f32[32,64], index: 1, kind: input, shape index: {}]
  %s2 = inlined_call_operand.vmem [shape: f32[1,64], index: 2, kind: input, shape index: {}]
  %s3 = inlined_call_operand.vmem [shape: f32[64,8], index: 3, kind: input, shape index: {}]
  %s4 = inlined_call_operand.vmem [shape: f32[1,8], index: 4, kind: input, shape index: {}]
  %s5 = inlined_call_operand.hbm [shape: f32[8,8], index: 5, kind: output, shape index: {}]
  %s6 = sld [smem:[#allocation0]]
  $region30: #{actor_forward.1} parent=0
    _
  %s8 = ssub.s32 1, %s6
  %s9 = scalar_select 0, %s8, %s6
  $region1: #{actor_forward.1} parent=0
    #allocation2 [shape = 'u8[4096]{0}', space=vmem, size = 0x1000, scoped, tag = 'output window, operand 0, single buffered']
    #allocation3 [shape = 's32[1]{0}', space=sflag, size = 0x4, scoped, tag = 'scoped memory for actor_forward.1']
    %10 = vsyncpa [#allocation3], 0
    // Predicated region
    $region2: #{actor_forward.1} parent=1 // pred_check
      _
    $region3: #{actor_forward.1} parent=1 // pred_check_branch
      %12 = sbr.rel (0) target = $region5
    $region4: #{actor_forward.1} parent=1 // pred_region
      _
    $region5: #{actor_forward.1} parent=1 // pred_fallthru
      _
    // Predicated region
    $region6: #{actor_forward.1} parent=1 // pred_check
      _
    $region7: #{actor_forward.1} parent=1 // pred_check_branch
      %14 = sbr.rel (0) target = $region9
    $region8: #{actor_forward.1} parent=1 // pred_region
      _
    $region9: #{actor_forward.1} parent=1 // pred_fallthru
      _
    // Predicated region
    $region10: #{actor_forward.1} parent=1 // pred_check
      _
    $region11: #{actor_forward.1} parent=1 // pred_check_branch
      %16 = sbr.rel (0) target = $region13
    $region12: #{actor_forward.1} parent=1 // pred_region
      _
    $region13: #{actor_forward.1} parent=1 // pred_fallthru
      _
    // Predicated region
    $region14: #{actor_forward.1} parent=1 // pred_check
      _
    $region15: #{actor_forward.1} parent=1 // pred_check_branch
      %18 = sbr.rel (0) target = $region17
    $region16: #{actor_forward.1} parent=1 // pred_region
      _
    $region17: #{actor_forward.1} parent=1 // pred_fallthru
      _
    // Predicated region
    $region18: #{actor_forward.1} parent=1 // pred_check
      _
    $region19: #{actor_forward.1} parent=1 // pred_check_branch
      %20 = sbr.rel (0) target = $region21
    $region20: #{actor_forward.1} parent=1 // pred_region
      _
    $region21: #{actor_forward.1} parent=1 // pred_fallthru
      _
    %v21 = vld [vmem:[%s0] sm:$0xff]
    %v22 = vld [vmem:[%s1] sm:$0xff]
    %v23 = vld [vmem:[%s1 + $0x8] sm:$0xff]
    %v24 = vld [vmem:[%s1 + $0x10] sm:$0xff]
    %v25 = vld [vmem:[%s1 + $0x18] sm:$0xff]
    %v26 = vld [vmem:[%s2] sm:$0x1]
    %v28 = vlaneseq
    %v29 = vshrl.u32 %v28, 7
    %v30 = vsub.s32 0, %v29
    %v31 = vrot.slane %v26, %v30
    %vm33 = vcmask 261120
    %v35 = vsel %vm33, %v21, 0
    %37 = vmatprep.subr.mxu0 0.0
    %38 = vmatpush1.msra.mxu0 0.0
    %39 = vmatprep.subr.mxu0 0.0
    %40 = vmatpush1.msra.mxu0 0.0
    %41 = vmatprep.subr.mxu0 0.0
    %42 = vmatpush1.msra.mxu0 0.0
    %43 = vmatprep.subr.mxu0 0.0
    %44 = vmatpush1.msra.mxu0 0.0
    %45 = vmatprep.subr.mxu0 0.0
    %46 = vmatpush1.msra.mxu0 0.0
    %47 = vmatprep.subr.mxu0 0.0
    %48 = vmatpush1.msra.mxu0 0.0
    %49 = vmatprep.subr.mxu0 0.0
    %50 = vmatpush1.msra.mxu0 0.0
    %51 = vmatprep.subr.mxu0 0.0
    %52 = vmatpush1.msra.mxu0 0.0
    %53 = vmatprep.subr.mxu0 0.0
    %54 = vmatpush1.msra.mxu0 0.0
    %55 = vmatprep.subr.mxu0 0.0
    %56 = vmatpush1.msra.mxu0 0.0
    %57 = vmatprep.subr.mxu0 0.0
    %58 = vmatpush1.msra.mxu0 0.0
    %59 = vmatprep.subr.mxu0 0.0
    %60 = vmatpush1.msra.mxu0 0.0
    %61 = vmatprep.subr.mxu0 0.0
    %62 = vmatpush1.msra.mxu0 %v25
    %63 = vmatprep.subr.mxu0 0.0
    %64 = vmatpush1.msra.mxu0 %v24
    %65 = vmatprep.subr.mxu0 0.0
    %66 = vmatpush1.msra.mxu0 %v23
    %67 = vmatprep.subr.mxu0 0.0
    %68 = vmatpush1.msra.mxu0 %v22
    %69 = vmatprep.subr.mxu0 0.0
    %70 = vmatpush2.msra.mxu0 0.0
    %71 = vmatprep.subr.mxu0 0.0
    %72 = vmatpush2.msra.mxu0 0.0
    %73 = vmatprep.subr.mxu0 0.0
    %74 = vmatpush2.msra.mxu0 0.0
    %75 = vmatprep.subr.mxu0 0.0
    %76 = vmatpush2.msra.mxu0 0.0
    %77 = vmatprep.subr.mxu0 0.0
    %78 = vmatpush2.msra.mxu0 0.0
    %79 = vmatprep.subr.mxu0 0.0
    %80 = vmatpush2.msra.mxu0 0.0
    %81 = vmatprep.subr.mxu0 0.0
    %82 = vmatpush2.msra.mxu0 0.0
    %83 = vmatprep.subr.mxu0 0.0
    %84 = vmatpush2.msra.mxu0 0.0
    %85 = vmatprep.subr.mxu0 0.0
    %86 = vmatpush2.msra.mxu0 0.0
    %87 = vmatprep.subr.mxu0 0.0
    %88 = vmatpush2.msra.mxu0 0.0
    %89 = vmatprep.subr.mxu0 0.0
    %90 = vmatpush2.msra.mxu0 0.0
    %91 = vmatprep.subr.mxu0 0.0
    %92 = vmatpush2.msra.mxu0 0.0
    %93 = vmatprep.subr.mxu0 0.0
    %94 = vmatpush2.msra.mxu0 0.0
    %95 = vmatprep.subr.mxu0 0.0
    %96 = vmatpush2.msra.mxu0 0.0
    %97 = vmatprep.subr.mxu0 0.0
    %98 = vmatpush2.msra.mxu0 0.0
    %99 = vmatprep.subr.mxu0 0.0
    %100 = vmatpush2.msra.mxu0 0.0
    %101 = vmatprep.mubr.f32.mxu0 0.0
    %102 = vmatmul.mubr.f32.gmra.mxu0 %v35
    %v103 = vpop.f32.mrf.mxu0
    %v104 = vadd.f32 %v31, %v103
    %v105 = vpop.f32.mrf.mxu0
    %106 = vdwg.mxu0
    %v107 = vmax.f32 %v104, 0.0
    %v108 = vld [vmem:[%s3] sm:$0xff]
    %v109 = vld [vmem:[%s3 + $0x8] sm:$0xff]
    %v110 = vld [vmem:[%s3 + $0x10] sm:$0xff]
    %v111 = vld [vmem:[%s3 + $0x18] sm:$0xff]
    %v112 = vld [vmem:[%s3 + $0x20] sm:$0xff]
    %v113 = vld [vmem:[%s3 + $0x28] sm:$0xff]
    %v114 = vld [vmem:[%s3 + $0x30] sm:$0xff]
    %v115 = vld [vmem:[%s3 + $0x38] sm:$0xff]
    %v116 = vld [vmem:[%s4] sm:$0x1]
    %v118 = vlaneseq
    %v119 = vshrl.u32 %v118, 7
    %v120 = vsub.s32 0, %v119
    %v121 = vrot.slane %v116, %v120
    %vm123 = vcmask 523264
    %v125 = vsel %vm123, %v107, 0
    %127 = vmatprep.subr.mxu0 0.0
    %128 = vmatpush1.msra.mxu0 0.0
    %129 = vmatprep.subr.mxu0 0.0
    %130 = vmatpush1.msra.mxu0 0.0
    %131 = vmatprep.subr.mxu0 0.0
    %132 = vmatpush1.msra.mxu0 0.0
    %133 = vmatprep.subr.mxu0 0.0
    %134 = vmatpush1.msra.mxu0 0.0
    %135 = vmatprep.subr.mxu0 0.0
    %136 = vmatpush1.msra.mxu0 0.0
    %137 = vmatprep.subr.mxu0 0.0
    %138 = vmatpush1.msra.mxu0 0.0
    %139 = vmatprep.subr.mxu0 0.0
    %140 = vmatpush1.msra.mxu0 0.0
    %141 = vmatprep.subr.mxu0 0.0
    %142 = vmatpush1.msra.mxu0 0.0
    %143 = vmatprep.subr.mxu0 0.0
    %144 = vmatpush1.msra.mxu0 %v115
    %145 = vmatprep.subr.mxu0 0.0
    %146 = vmatpush1.msra.mxu0 %v114
    %147 = vmatprep.subr.mxu0 0.0
    %148 = vmatpush1.msra.mxu0 %v113
    %149 = vmatprep.subr.mxu0 0.0
    %150 = vmatpush1.msra.mxu0 %v112
    %151 = vmatprep.subr.mxu0 0.0
    %152 = vmatpush1.msra.mxu0 %v111
    %153 = vmatprep.subr.mxu0 0.0
    %154 = vmatpush1.msra.mxu0 %v110
    %155 = vmatprep.subr.mxu0 0.0
    %156 = vmatpush1.msra.mxu0 %v109
    %157 = vmatprep.subr.mxu0 0.0
    %158 = vmatpush1.msra.mxu0 %v108
    %159 = vmatprep.subr.mxu0 0.0
    %160 = vmatpush2.msra.mxu0 0.0
    %161 = vmatprep.subr.mxu0 0.0
    %162 = vmatpush2.msra.mxu0 0.0
    %163 = vmatprep.subr.mxu0 0.0
    %164 = vmatpush2.msra.mxu0 0.0
    %165 = vmatprep.subr.mxu0 0.0
    %166 = vmatpush2.msra.mxu0 0.0
    %167 = vmatprep.subr.mxu0 0.0
    %168 = vmatpush2.msra.mxu0 0.0
    %169 = vmatprep.subr.mxu0 0.0
    %170 = vmatpush2.msra.mxu0 0.0
    %171 = vmatprep.subr.mxu0 0.0
    %172 = vmatpush2.msra.mxu0 0.0
    %173 = vmatprep.subr.mxu0 0.0
    %174 = vmatpush2.msra.mxu0 0.0
    %175 = vmatprep.subr.mxu0 0.0
    %176 = vmatpush2.msra.mxu0 0.0
    %177 = vmatprep.subr.mxu0 0.0
    %178 = vmatpush2.msra.mxu0 0.0
    %179 = vmatprep.subr.mxu0 0.0
    %180 = vmatpush2.msra.mxu0 0.0
    %181 = vmatprep.subr.mxu0 0.0
    %182 = vmatpush2.msra.mxu0 0.0
    %183 = vmatprep.subr.mxu0 0.0
    %184 = vmatpush2.msra.mxu0 0.0
    %185 = vmatprep.subr.mxu0 0.0
    %186 = vmatpush2.msra.mxu0 0.0
    %187 = vmatprep.subr.mxu0 0.0
    %188 = vmatpush2.msra.mxu0 0.0
    %189 = vmatprep.subr.mxu0 0.0
    %190 = vmatpush2.msra.mxu0 0.0
    %191 = vmatprep.mubr.f32.mxu0 0.0
    %192 = vmatmul.mubr.f32.gmra.mxu0 %v125
    %v193 = vpop.f32.mrf.mxu0
    %v194 = vadd.f32 %v121, %v193
    %v195 = vpop.f32.mrf.mxu0
    %196 = vdwg.mxu0
    %vm197 = vcmask 64512
    %v198 = vsel %vm197, %v194, -inf
    %199 = vmax.xlane.f32.xlu0 %v198
    %v200 = vpop.xlane.xlu0 %199
    %v201 = vsub.f32 %v194, %v200
    %v202 = vmul.f32 %v201, 1.442695
    %v203 = vpow.pop %v202
    %v204 = vsel %vm197, %v203, 0.0
    %205 = vadd.xlane.f32.xlu0 %v204
    %v206 = vpop.xlane.xlu0 %205
    %v207 = vrcp.pop %v206
    %v208 = vmul.f32 %v203, %v207
    %209 = vst.msk [vmem:[#allocation2] sm:$0xff] %vm197, %v208
    // Predicated region
    $region22: #{actor_forward.1} parent=1 // pred_check
      _
    $region23: #{actor_forward.1} parent=1 // pred_check_branch
      %211 = sbr.rel (0) target = $region25
    $region24: #{actor_forward.1} parent=1 // pred_region
      %s213 = ssub.s32 128, 128
      %214 = vsyncadd [#allocation3], %s213
      %s216 = sshll.u32 [#allocation2], 4
      %s217 = int_to_ptr.vmem [resolvable:$true] %s216
      %219 = dma.vmem_to_hbm [thread:$0]  %s217, 128, %s5, [#allocation3]
    $region25: #{actor_forward.1} parent=1 // pred_fallthru
      _
    // Predicated region
    $region26: #{actor_forward.1} parent=1 // pred_check
      _
    $region27: #{actor_forward.1} parent=1 // pred_check_branch
      %221 = sbr.rel (0) target = $region29
    $region28: #{actor_forward.1} parent=1 // pred_region
      %222 = dma.done [#allocation3], 128
    $region29: #{actor_forward.1} parent=1 // pred_fallthru
      _
    %223 = vsyncpa [#allocation3], 1

</llo_original>
